<compile_context>
chip_gen: v5e
topology: v5e:2x2
jax: 0.10.0
libtpu: 0.0.40
codegen_flags: <defaults>
</compile_context>

<pallas_src>
import functools

import jax
import jax.numpy as jnp
from jax.experimental import pallas as pl
from jax.experimental.pallas import tpu as pltpu

_LANES = 128
_SUBLANE_BY_ITEMSIZE = {4: 8, 2: 16, 1: 32}


def _round_up(a, b):
    return ((a + b - 1) // b) * b


def _device_kind():
    try:
        return jax.devices()[0].device_kind.lower()
    except Exception:
        return ""


def _swish_kernel(x_ref, o_ref, *, compute_dtype):
    x = x_ref[...].astype(compute_dtype)
    # sigmoid(x) = 0.5 * tanh(0.5 * x) + 0.5  — one EUP transcendental, two
    # VPU ops, numerically stable for large |x| (no exp overflow / NaN).
    sig = 0.5 * jnp.tanh(0.5 * x) + 0.5
    o_ref[...] = (x * sig).astype(o_ref.dtype)


def _swish_2d(x2d, *, compute_dtype, multicore, target_block_bytes,
              vmem_limit_bytes):
    rows, lanes = x2d.shape
    itemsize = jnp.dtype(x2d.dtype).itemsize
    sublane = _SUBLANE_BY_ITEMSIZE.get(itemsize, 8)

    # Constant-byte tiles: same DMA size per grid step for every dtype.
    tile_rows = target_block_bytes // (lanes * itemsize)
    tile_rows = max(sublane, (tile_rows // sublane) * sublane)

    tr = min(tile_rows, _round_up(rows, sublane))

    # v7x megacore balance: if the grid would be tiny, split into (at least)
    # two even steps so neither TensorCore idles.
    if multicore and pl.cdiv(rows, tr) < 4:
        tr_bal = max(sublane, _round_up(pl.cdiv(rows, 2), sublane))
        tr = min(tr, tr_bal)

    grid = (pl.cdiv(rows, tr),)

    return pl.pallas_call(
        functools.partial(_swish_kernel, compute_dtype=compute_dtype),
        out_shape=jax.ShapeDtypeStruct((rows, lanes), x2d.dtype),
        grid_spec=pltpu.PrefetchScalarGridSpec(
            num_scalar_prefetch=0,
            grid=grid,
            in_specs=[pl.BlockSpec((tr, lanes), lambda i: (i, 0))],
            out_specs=pl.BlockSpec((tr, lanes), lambda i: (i, 0)),
        ),
        compiler_params=pltpu.CompilerParams(
            dimension_semantics=("parallel",),
            vmem_limit_bytes=vmem_limit_bytes,
        ),
    )(x2d)


def swish(x):
    """Elementwise Swish: x * sigmoid(x). Any shape, any float dtype."""
    orig_shape = x.shape
    orig_dtype = x.dtype
    n = x.size
    if n == 0:
        return x

    kind = _device_kind()
    is_v7 = "v7" in kind
    bf16_native = ("v6" in kind) or ("v7" in kind)

    compute_dtype = (
        jnp.bfloat16
        if (orig_dtype == jnp.bfloat16 and bf16_native)
        else jnp.float32
    )
    target_block_bytes = (4 << 20) if is_v7 else (2 << 20)
    vmem_limit_bytes = 32 << 20  # explicit budget; safe on v5e/v6e/v7x

    x_flat = jnp.ravel(x)
    n_main = (n // _LANES) * _LANES

    if n_main == 0:
        # Fewer than 128 elements: a single fused jnp op is memory-optimal.
        return x * jax.nn.sigmoid(x)

    rows = n_main // _LANES

    if n_main == n:
        # Common case (conv activations): zero extra copies.
        x2d = x_flat.reshape(rows, _LANES)
        y2d = _swish_2d(
            x2d,
            compute_dtype=compute_dtype,
            multicore=is_v7,
            target_block_bytes=target_block_bytes,
            vmem_limit_bytes=vmem_limit_bytes,
        )
        return y2d.reshape(orig_shape)

    # Unaligned size: Pallas kernel on the 128-aligned prefix; the <128
    # element tail is a tiny fused jnp op (no full-array pad + slice).
    x_main = x_flat[:n_main].reshape(rows, _LANES)
    y_main = _swish_2d(
        x_main,
        compute_dtype=compute_dtype,
        multicore=is_v7,
        target_block_bytes=target_block_bytes,
        vmem_limit_bytes=vmem_limit_bytes,
    )
    tail = x_flat[n_main:]
    y_tail = tail * jax.nn.sigmoid(tail)
    return jnp.concatenate([y_main.reshape(-1), y_tail]).reshape(orig_shape)


if __name__ == "__main__":
    swish_jit = jax.jit(swish)

    key = jax.random.PRNGKey(0)
    # NCHW input, consistent with the RexNet conv pipeline this Swish lives in.
    x = jax.random.normal(key, (2, 4, 16, 16), dtype=jnp.float32)

    y = swish_jit(x)
    jax.block_until_ready(y)

    y_ref = x * jax.nn.sigmoid(x)
    assert y.shape == x.shape and y.dtype == x.dtype
    assert jnp.allclose(y, y_ref, atol=1e-5, rtol=1e-5)

    # Non-128-divisible size, exercises the prefix-kernel + jnp-tail path.
    x_odd = jax.random.normal(jax.random.PRNGKey(1), (7, 33), dtype=jnp.float32)
    y_odd = swish_jit(x_odd)
    jax.block_until_ready(y_odd)
    assert y_odd.shape == x_odd.shape
    assert jnp.allclose(y_odd, x_odd * jax.nn.sigmoid(x_odd), atol=1e-5, rtol=1e-5)

    # Tiny array (<128 elements), exercises the fused-jnp fallback.
    x_tiny = jax.random.normal(jax.random.PRNGKey(2), (3, 5, 7), dtype=jnp.float32)
    y_tiny = swish_jit(x_tiny)
    jax.block_until_ready(y_tiny)
    assert jnp.allclose(y_tiny, x_tiny * jax.nn.sigmoid(x_tiny), atol=1e-5, rtol=1e-5)

    # bf16 I/O (native bf16 compute on v6e/v7x, f32 upcast elsewhere).
    x_bf = x.astype(jnp.bfloat16)
    y_bf = swish_jit(x_bf)
    jax.block_until_ready(y_bf)
    assert y_bf.dtype == jnp.bfloat16
    x_bf_f32 = x_bf.astype(jnp.float32)
    assert jnp.allclose(
        y_bf.astype(jnp.float32),
        x_bf_f32 * jax.nn.sigmoid(x_bf_f32),
        atol=2e-2, rtol=2e-2,
    )

    print("KERNEL_OK")
</pallas_src>

<mosaic_0001>
module attributes {stable_mosaic.version = 11 : i64} {
  func.func @_swish_kernel(%arg0: i32, %arg1: memref<16x128xf32, #tpu.memory_space<vmem>>, %arg2: memref<16x128xf32, #tpu.memory_space<vmem>>) attributes {dimension_semantics = [#tpu.dimension_semantics<parallel>], iteration_bounds = array<i64: 1>, scalar_prefetch = 0 : i64, scratch_operands = 0 : i64, tpu.core_type = #tpu.core_type<tc>, window_params = [{transform_indices = @transform_0, window_bounds = array<i64: 16, 128>}, {transform_indices = @transform_1, window_bounds = array<i64: 16, 128>}]} {
    %c0 = arith.constant 0 : index
    %c0_0 = arith.constant 0 : index
    %0 = vector.load %arg1[%c0, %c0_0] : memref<16x128xf32, #tpu.memory_space<vmem>>, vector<16x128xf32>
    %cst = arith.constant 5.000000e-01 : f32
    %1 = vector.broadcast %cst : f32 to vector<16x128xf32>
    %2 = arith.mulf %1, %0 : vector<16x128xf32>
    %3 = math.tanh %2 : vector<16x128xf32>
    %cst_1 = arith.constant 5.000000e-01 : f32
    %4 = vector.broadcast %cst_1 : f32 to vector<16x128xf32>
    %5 = arith.mulf %4, %3 : vector<16x128xf32>
    %cst_2 = arith.constant 5.000000e-01 : f32
    %6 = vector.broadcast %cst_2 : f32 to vector<16x128xf32>
    %7 = arith.addf %5, %6 : vector<16x128xf32>
    %8 = arith.mulf %0, %7 : vector<16x128xf32>
    %c0_3 = arith.constant 0 : index
    %c0_4 = arith.constant 0 : index
    %9 = vector.load %arg2[%c0_3, %c0_4] : memref<16x128xf32, #tpu.memory_space<vmem>>, vector<16x128xf32>
    tpu.vector_store %arg2[%c0_3, %c0_4], %8 {strides = array<i32>} : memref<16x128xf32, #tpu.memory_space<vmem>>, vector<16x128xf32>,
    return
  }
  func.func @transform_0(%arg0: i32) -> (i32, i32) {
    %c0_i32 = arith.constant 0 : i32
    %c0_i32_0 = arith.constant 0 : i32
    return %arg0, %c0_i32 : i32, i32
  }
  func.func @transform_1(%arg0: i32) -> (i32, i32) {
    %c0_i32 = arith.constant 0 : i32
    %c0_i32_0 = arith.constant 0 : i32
    return %arg0, %c0_i32 : i32, i32
  }
}

</mosaic_0001>

<llo_original>
// kernel: swish.1
$region0: #{swish.1}
  #allocation0 [shape = 'u32[]', space=smem, size = 0x4, offset = 0x4, fixed_abs, tag = 'smem constant byte address 0x4 - core index']
  #allocation1 [shape = 'u32[72,128]{1,0:T(1,128)}', space=vmem, size = 0x9000, scoped, tag = 'internal scratch']
  %s0 = inlined_call_operand.vmem [shape: f32[16,128], index: 0, kind: input, shape index: {}]
  %s1 = inlined_call_operand.vmem [shape: f32[16,128], index: 1, kind: output, shape index: {}]
  %s2 = sld [smem:[#allocation0]]
  $region14: #{swish.1} parent=0
    _
  %s4 = ssub.s32 1, %s2
  %s5 = scalar_select 0, %s4, %s2
  // Predicated region
  $region2: #{swish.1} parent=0 // pred_check
    _
  $region3: #{swish.1} parent=0 // pred_check_branch
    %7 = sbr.rel (0) target = $region5
  $region4: #{swish.1} parent=0 // pred_region
    _
  $region5: #{swish.1} parent=0 // pred_fallthru
    _
  %v8 = vld [vmem:[%s0] sm:$0xff]
  %v9 = vld [vmem:[%s0 + $0x8] sm:$0xff]
  %v10 = vmul.f32 %v8, 0.5
  %v11 = vmul.f32 %v9, 0.5
  %v12 = vtanh.pop %v10
  %v13 = vtanh.pop %v11
  %v14 = vmul.f32 %v12, 0.5
  %v15 = vmul.f32 %v13, 0.5
  %v16 = vadd.f32 %v14, 0.5
  %v17 = vadd.f32 %v15, 0.5
  %v18 = vmul.f32 %v8, %v16
  %v19 = vmul.f32 %v9, %v17
  %20 = vst [vmem:[%s1] sm:$0xff] %v18
  %21 = vst [vmem:[%s1 + $0x8] sm:$0xff] %v19
  // Predicated region
  $region6: #{swish.1} parent=0 // pred_check
    _
  $region7: #{swish.1} parent=0 // pred_check_branch
    %23 = sbr.rel (0) target = $region9
  $region8: #{swish.1} parent=0 // pred_region
    _
  $region9: #{swish.1} parent=0 // pred_fallthru
    _
  // Predicated region
  $region10: #{swish.1} parent=0 // pred_check
    _
  $region11: #{swish.1} parent=0 // pred_check_branch
    %25 = sbr.rel (0) target = $region13
  $region12: #{swish.1} parent=0 // pred_region
    _
  $region13: #{swish.1} parent=0 // pred_fallthru
    _

</llo_original>
